<compile_context>
chip_gen: v6e
topology: v6e:2x2x1
jax: 0.10.0
libtpu: 0.0.40
codegen_flags: <defaults>
</compile_context>

<pallas_src>
import functools

import numpy as np
import jax
import jax.numpy as jnp
from jax import lax
from jax.experimental import pallas as pl
from jax.experimental.pallas import tpu as pltpu

KERNEL_SIZE = 25          # SeriesDecomposition moving-average window
LN_EPS = 1e-5             # nn.LayerNorm default eps


def fed_kernel(x_ref, avg_ref, bw_ref, r_ref, c_ref, bias_ref, gamma_ref,
               beta_ref, o_ref, *, inv_k, inv_d):
    """One batch-tile in (L, TB*D) lane-dense layout.

    All MXU matmuls take bf16 operands with f32 accumulation; every scale /
    moment / normalization stays in f32 on the VPU.
    """
    x = x_ref[...]                                              # (L, TBD) bf16
    L = x.shape[0]

    # trend: zero-padded moving average along time.  avg_ref is an exact 0/1
    # band matrix; the 1/kernel_size scale is applied in f32.
    trend = jnp.dot(avg_ref[...], x,
                    preferred_element_type=jnp.float32) * inv_k  # (L,TBD) f32

    # frequency block on the seasonal part:
    #   irfft(proj(rfft(s)), n=L) == s @ W^T + c (x) bias   (real-DFT identity)
    s = (x.astype(jnp.float32) - trend).astype(jnp.bfloat16)
    sw = jnp.dot(s, bw_ref[...], preferred_element_type=jnp.float32)

    # residual add; rank-1 constant built by a VPU broadcast outer product.
    y = sw + trend + c_ref[...] * bias_ref[...]                  # (L,TBD) f32

    # LayerNorm statistics: ONE bf16 matmul on [y ; y*y] stacked along
    # sublanes against the exact 0/1 block matrix; scale & moments in f32.
    yy = jnp.concatenate(
        [y.astype(jnp.bfloat16), (y * y).astype(jnp.bfloat16)], axis=0)
    stats = jnp.dot(yy, r_ref[...],
                    preferred_element_type=jnp.float32) * inv_d  # (2L,TBD)
    mu = stats[:L]
    var = jnp.maximum(stats[L:] - mu * mu, 0.0)   # guard E[y^2]-mu^2 cancellation

    y_norm = (y - mu) * lax.rsqrt(var + LN_EPS)
    o_ref[...] = (y_norm * gamma_ref[...] + beta_ref[...]).astype(o_ref.dtype)


def _host_constants(L, D, TB, W, bias, gamma, beta):
    """Fuse decomposition + rfft/Linear/irfft into a few small matrices (f64)."""
    pad = KERNEL_SIZE // 2
    t = np.arange(L)

    # AvgPool1d(kernel, stride=1, padding=kernel//2), count_include_pad=True:
    # 0/1 band matrix (exact in bf16); 1/kernel scale applied in-kernel.
    avg01 = (np.abs(t[:, None] - t[None, :]) <= pad).astype(np.float64)

    # FrequencyBlock: irfft(proj(rfft(s)), n=L) == s @ W^T + c (x) bias because
    # the real-DFT synthesis/analysis pair is exactly the identity; only the
    # rank-1 bias response c survives.
    F = L // 2 + 1
    k = np.arange(F)
    w = np.where((k == 0) | ((L % 2 == 0) & (k == L // 2)), 1.0, 2.0)
    ang = 2.0 * np.pi * np.outer(t, k) / L                       # (L, F)
    c = ((np.cos(ang) - np.sin(ang)) * w[None, :]).sum(axis=1) / L   # (L,)

    Wt = np.asarray(W, np.float64).T                             # (D, D)
    bw = np.kron(np.eye(TB), Wt)                                 # (TBD, TBD)
    r01 = np.kron(np.eye(TB), np.ones((D, D)))                   # LN block-sum
    tile = lambda v: np.tile(np.asarray(v, np.float64)[None, :], (1, TB))

    bf16 = lambda a: jnp.asarray(a, jnp.bfloat16)
    f32 = lambda a: jnp.asarray(a, jnp.float32)
    return (bf16(avg01), bf16(bw), bf16(r01), f32(c[:, None]),
            f32(tile(bias)), f32(tile(gamma)), f32(tile(beta)))


def _pick_batch_tile(B, D):
    """Largest batch tile with TB*D <= 256, lane-legal when G > 1, preferring a
    lane-dense (>=128) tile and >= 2 grid steps (v7x megacore)."""
    best = None
    for tb in range(1, B + 1):
        if B % tb:
            continue
        tbd, g = tb * D, B // tb
        if g > 1 and tbd % 128:
            continue          # partial blocks: last dim must be 128-multiple
        if tbd > 256:
            continue          # cap the block-diagonal kron expansion
        score = (tbd >= 128, g >= 2, tbd)
        if best is None or score > best[1]:
            best = (tb, score)
    return best[0] if best is not None else B


def fedformer_encoder_layer(x, W, bias, gamma, beta, *, batch_tile=None):
    B, L, D = x.shape
    TB = _pick_batch_tile(B, D) if batch_tile is None else batch_tile
    if B % TB:
        raise ValueError("batch must be divisible by batch_tile")
    G = B // TB
    TBD = TB * D
    if G > 1 and TBD % 128:
        raise ValueError("batch_tile * d_model must be a multiple of 128 when "
                         "the grid has more than one step")

    avg_bf, bw_bf, r_bf, c, bias_t, gam, bet = _host_constants(
        L, D, TB, W, bias, gamma, beta)

    # lane-dense (time, batch*feature) layout; bf16 feed for the MXU
    xt = jnp.transpose(jnp.asarray(x, jnp.float32), (1, 0, 2)).reshape(L, B * D)
    xt = xt.astype(jnp.bfloat16)

    flops = G * 2 * L * TBD * (L + 3 * TBD)
    bytes_accessed = (6 * L * B * D                 # bf16 in + f32 out
                      + 2 * L * L + 4 * TBD * TBD   # bf16 constants
                      + 4 * (L + 3 * TBD))          # f32 rank-1 / affine consts

    kernel = functools.partial(fed_kernel,
                               inv_k=1.0 / KERNEL_SIZE, inv_d=1.0 / D)

    out = pl.pallas_call(
        kernel,
        out_shape=jax.ShapeDtypeStruct((L, B * D), jnp.float32),
        grid_spec=pltpu.PrefetchScalarGridSpec(
            num_scalar_prefetch=0,
            grid=(G,),
            in_specs=[
                pl.BlockSpec((L, TBD), lambda g: (0, g)),     # x batch-tile
                pl.BlockSpec((L, L), lambda g: (0, 0)),       # 0/1 moving-avg band
                pl.BlockSpec((TBD, TBD), lambda g: (0, 0)),   # block-diag W^T
                pl.BlockSpec((TBD, TBD), lambda g: (0, 0)),   # 0/1 LN block matrix
                pl.BlockSpec((L, 1), lambda g: (0, 0)),       # c factor (rank-1)
                pl.BlockSpec((1, TBD), lambda g: (0, 0)),     # bias  (tiled)
                pl.BlockSpec((1, TBD), lambda g: (0, 0)),     # gamma (tiled)
                pl.BlockSpec((1, TBD), lambda g: (0, 0)),     # beta  (tiled)
            ],
            out_specs=pl.BlockSpec((L, TBD), lambda g: (0, g)),
        ),
        compiler_params=pltpu.CompilerParams(
            dimension_semantics=("parallel",)),
        cost_estimate=pl.CostEstimate(
            flops=flops, transcendentals=G * L * TBD,
            bytes_accessed=bytes_accessed),
    )(xt, avg_bf, bw_bf, r_bf, c, bias_t, gam, bet)

    # layout plumbing back to (B, L, D) on the host side
    return jnp.transpose(out.reshape(L, B, D), (1, 0, 2))


def reference_np(x, W, bias, gamma, beta):
    """Pure numpy (float64) reference matching the PyTorch forward (eval mode)."""
    x = np.asarray(x, np.float64)
    W = np.asarray(W, np.float64)
    bias = np.asarray(bias, np.float64)
    gamma = np.asarray(gamma, np.float64)
    beta = np.asarray(beta, np.float64)
    B, L, D = x.shape
    pad = KERNEL_SIZE // 2
    xp = np.pad(x, ((0, 0), (pad, pad), (0, 0)))
    trend = np.stack(
        [xp[:, s:s + KERNEL_SIZE].sum(axis=1) / KERNEL_SIZE for s in range(L)],
        axis=1)
    seasonal = x - trend
    freq = np.fft.rfft(seasonal, axis=1)
    re = freq.real @ W.T + bias
    im = freq.imag @ W.T + bias
    seasonal_f = np.fft.irfft(re + 1j * im, n=L, axis=1)
    y = seasonal_f + trend
    mu = y.mean(-1, keepdims=True)
    var = ((y - mu) ** 2).mean(-1, keepdims=True)
    return (y - mu) / np.sqrt(var + LN_EPS) * gamma + beta


if __name__ == "__main__":
    # small shapes: batch=8, seq=32, d_model=64  ->  TBD=256, 2 parallel steps
    B, L, D = 8, 32, 64
    key = jax.random.PRNGKey(0)
    kx, kw, kb, kg, kbt = jax.random.split(key, 5)

    x = jax.random.normal(kx, (B, L, D), dtype=jnp.float32)
    bound = 1.0 / np.sqrt(D)
    W = jax.random.uniform(kw, (D, D), jnp.float32, -bound, bound)     # proj weight
    bias = jax.random.uniform(kb, (D,), jnp.float32, -bound, bound)    # proj bias
    gamma = 1.0 + 0.1 * jax.random.normal(kg, (D,), jnp.float32)       # LN weight
    beta = 0.1 * jax.random.normal(kbt, (D,), jnp.float32)             # LN bias

    out = fedformer_encoder_layer(x, W, bias, gamma, beta)
    out = jax.block_until_ready(out)

    ref = reference_np(x, W, bias, gamma, beta)
    np.testing.assert_allclose(np.asarray(out), ref, rtol=5e-2, atol=5e-2)

    print("KERNEL_OK")
</pallas_src>

<mosaic_0001>
module attributes {stable_mosaic.version = 11 : i64} {
  func.func @fed_kernel(%arg0: i32, %arg1: memref<32x256xbf16, #tpu.memory_space<vmem>>, %arg2: memref<32x32xbf16, #tpu.memory_space<vmem>>, %arg3: memref<256x256xbf16, #tpu.memory_space<vmem>>, %arg4: memref<256x256xbf16, #tpu.memory_space<vmem>>, %arg5: memref<32x1xf32, #tpu.memory_space<vmem>>, %arg6: memref<1x256xf32, #tpu.memory_space<vmem>>, %arg7: memref<1x256xf32, #tpu.memory_space<vmem>>, %arg8: memref<1x256xf32, #tpu.memory_space<vmem>>, %arg9: memref<32x256xf32, #tpu.memory_space<vmem>>) attributes {dimension_semantics = [#tpu.dimension_semantics<parallel>], iteration_bounds = array<i64: 2>, scalar_prefetch = 0 : i64, scratch_operands = 0 : i64, tpu.core_type = #tpu.core_type<tc>, window_params = [{transform_indices = @transform_0, window_bounds = array<i64: 32, 256>}, {pipeline_mode = #tpu.pipeline_mode<synchronous>, transform_indices = @transform_1, window_bounds = array<i64: 32, 32>}, {pipeline_mode = #tpu.pipeline_mode<synchronous>, transform_indices = @transform_2, window_bounds = array<i64: 256, 256>}, {pipeline_mode = #tpu.pipeline_mode<synchronous>, transform_indices = @transform_3, window_bounds = array<i64: 256, 256>}, {pipeline_mode = #tpu.pipeline_mode<synchronous>, transform_indices = @transform_4, window_bounds = array<i64: 32, 1>}, {pipeline_mode = #tpu.pipeline_mode<synchronous>, transform_indices = @transform_5, window_bounds = array<i64: 1, 256>}, {pipeline_mode = #tpu.pipeline_mode<synchronous>, transform_indices = @transform_6, window_bounds = array<i64: 1, 256>}, {pipeline_mode = #tpu.pipeline_mode<synchronous>, transform_indices = @transform_7, window_bounds = array<i64: 1, 256>}, {transform_indices = @transform_8, window_bounds = array<i64: 32, 256>}]} {
    %c0 = arith.constant 0 : index
    %c0_0 = arith.constant 0 : index
    %0 = vector.load %arg1[%c0, %c0_0] : memref<32x256xbf16, #tpu.memory_space<vmem>>, vector<32x256xbf16>
    %c0_1 = arith.constant 0 : index
    %c0_2 = arith.constant 0 : index
    %1 = vector.load %arg2[%c0_1, %c0_2] : memref<32x32xbf16, #tpu.memory_space<vmem>>, vector<32x32xbf16>
    %cst = arith.constant dense<0.000000e+00> : vector<32x256xf32>
    %2 = tpu.matmul %1, %0, %cst {dimension_numbers = #tpu.dot_dimension_numbers<[1], [0], [0], [1], [0, 0, 1, 1], [], []>} : vector<32x32xbf16>, vector<32x256xbf16>, vector<32x256xf32> -> vector<32x256xf32>
    %cst_3 = arith.constant 4.000000e-02 : f32
    %3 = vector.broadcast %cst_3 : f32 to vector<32x256xf32>
    %4 = arith.mulf %2, %3 : vector<32x256xf32>
    %5 = arith.extf %0 : vector<32x256xbf16> to vector<32x256xf32>
    %6 = arith.subf %5, %4 : vector<32x256xf32>
    %7 = arith.truncf %6 : vector<32x256xf32> to vector<32x256xbf16>
    %c0_4 = arith.constant 0 : index
    %c0_5 = arith.constant 0 : index
    %8 = vector.load %arg3[%c0_4, %c0_5] : memref<256x256xbf16, #tpu.memory_space<vmem>>, vector<256x256xbf16>
    %cst_6 = arith.constant dense<0.000000e+00> : vector<32x256xf32>
    %9 = tpu.matmul %7, %8, %cst_6 {dimension_numbers = #tpu.dot_dimension_numbers<[1], [0], [0], [1], [0, 0, 1, 1], [], []>} : vector<32x256xbf16>, vector<256x256xbf16>, vector<32x256xf32> -> vector<32x256xf32>
    %10 = arith.addf %9, %4 : vector<32x256xf32>
    %c0_7 = arith.constant 0 : index
    %c0_8 = arith.constant 0 : index
    %11 = vector.load %arg5[%c0_7, %c0_8] : memref<32x1xf32, #tpu.memory_space<vmem>>, vector<32x1xf32>
    %c0_9 = arith.constant 0 : index
    %c0_10 = arith.constant 0 : index
    %12 = vector.load %arg6[%c0_9, %c0_10] : memref<1x256xf32, #tpu.memory_space<vmem>>, vector<1x256xf32>
    %13 = vector.broadcast %11 : vector<32x1xf32> to vector<32x256xf32>
    %14 = vector.broadcast %12 : vector<1x256xf32> to vector<32x256xf32>
    %15 = arith.mulf %13, %14 : vector<32x256xf32>
    %16 = arith.addf %10, %15 : vector<32x256xf32>
    %17 = arith.truncf %16 : vector<32x256xf32> to vector<32x256xbf16>
    %18 = arith.mulf %16, %16 : vector<32x256xf32>
    %19 = arith.truncf %18 : vector<32x256xf32> to vector<32x256xbf16>
    %20 = tpu.concatenate %17, %19 in 0 : vector<32x256xbf16>, vector<32x256xbf16> -> vector<64x256xbf16>
    %c0_11 = arith.constant 0 : index
    %c0_12 = arith.constant 0 : index
    %21 = vector.load %arg4[%c0_11, %c0_12] : memref<256x256xbf16, #tpu.memory_space<vmem>>, vector<256x256xbf16>
    %cst_13 = arith.constant dense<0.000000e+00> : vector<64x256xf32>
    %22 = tpu.matmul %20, %21, %cst_13 {dimension_numbers = #tpu.dot_dimension_numbers<[1], [0], [0], [1], [0, 0, 1, 1], [], []>} : vector<64x256xbf16>, vector<256x256xbf16>, vector<64x256xf32> -> vector<64x256xf32>
    %cst_14 = arith.constant 1.562500e-02 : f32
    %23 = vector.broadcast %cst_14 : f32 to vector<64x256xf32>
    %24 = arith.mulf %22, %23 : vector<64x256xf32>
    %25 = vector.extract_strided_slice %24 {offsets = [0, 0], sizes = [32, 256], strides = [1, 1]} : vector<64x256xf32> to vector<32x256xf32>
    %26 = vector.extract_strided_slice %24 {offsets = [32, 0], sizes = [32, 256], strides = [1, 1]} : vector<64x256xf32> to vector<32x256xf32>
    %27 = arith.mulf %25, %25 : vector<32x256xf32>
    %28 = arith.subf %26, %27 : vector<32x256xf32>
    %cst_15 = arith.constant 0.000000e+00 : f32
    %29 = vector.broadcast %cst_15 : f32 to vector<32x256xf32>
    %30 = arith.maximumf %28, %29 : vector<32x256xf32>
    %31 = arith.subf %16, %25 : vector<32x256xf32>
    %cst_16 = arith.constant 9.99999974E-6 : f32
    %32 = vector.broadcast %cst_16 : f32 to vector<32x256xf32>
    %33 = arith.addf %30, %32 : vector<32x256xf32>
    %34 = math.rsqrt %33 : vector<32x256xf32>
    %35 = arith.mulf %31, %34 : vector<32x256xf32>
    %c0_17 = arith.constant 0 : index
    %c0_18 = arith.constant 0 : index
    %36 = vector.load %arg7[%c0_17, %c0_18] : memref<1x256xf32, #tpu.memory_space<vmem>>, vector<1x256xf32>
    %37 = vector.broadcast %36 : vector<1x256xf32> to vector<32x256xf32>
    %38 = arith.mulf %35, %37 : vector<32x256xf32>
    %c0_19 = arith.constant 0 : index
    %c0_20 = arith.constant 0 : index
    %39 = vector.load %arg8[%c0_19, %c0_20] : memref<1x256xf32, #tpu.memory_space<vmem>>, vector<1x256xf32>
    %40 = vector.broadcast %39 : vector<1x256xf32> to vector<32x256xf32>
    %41 = arith.addf %38, %40 : vector<32x256xf32>
    %c0_21 = arith.constant 0 : index
    %c0_22 = arith.constant 0 : index
    %42 = vector.load %arg9[%c0_21, %c0_22] : memref<32x256xf32, #tpu.memory_space<vmem>>, vector<32x256xf32>
    tpu.vector_store %arg9[%c0_21, %c0_22], %41 {strides = array<i32>} : memref<32x256xf32, #tpu.memory_space<vmem>>, vector<32x256xf32>,
    return
  }
  func.func @transform_0(%arg0: i32) -> (i32, i32) {
    %c0_i32 = arith.constant 0 : i32
    %c0_i32_0 = arith.constant 0 : i32
    return %c0_i32, %arg0 : i32, i32
  }
  func.func @transform_1(%arg0: i32) -> (i32, i32) {
    %c0_i32 = arith.constant 0 : i32
    %c0_i32_0 = arith.constant 0 : i32
    %c0_i32_1 = arith.constant 0 : i32
    return %c0_i32, %c0_i32_0 : i32, i32
  }
  func.func @transform_2(%arg0: i32) -> (i32, i32) {
    %c0_i32 = arith.constant 0 : i32
    %c0_i32_0 = arith.constant 0 : i32
    %c0_i32_1 = arith.constant 0 : i32
    return %c0_i32, %c0_i32_0 : i32, i32
  }
  func.func @transform_3(%arg0: i32) -> (i32, i32) {
    %c0_i32 = arith.constant 0 : i32
    %c0_i32_0 = arith.constant 0 : i32
    %c0_i32_1 = arith.constant 0 : i32
    return %c0_i32, %c0_i32_0 : i32, i32
  }
  func.func @transform_4(%arg0: i32) -> (i32, i32) {
    %c0_i32 = arith.constant 0 : i32
    %c0_i32_0 = arith.constant 0 : i32
    %c0_i32_1 = arith.constant 0 : i32
    return %c0_i32, %c0_i32_0 : i32, i32
  }
  func.func @transform_5(%arg0: i32) -> (i32, i32) {
    %c0_i32 = arith.constant 0 : i32
    %c0_i32_0 = arith.constant 0 : i32
    %c0_i32_1 = arith.constant 0 : i32
    return %c0_i32, %c0_i32_0 : i32, i32
  }
  func.func @transform_6(%arg0: i32) -> (i32, i32) {
    %c0_i32 = arith.constant 0 : i32
    %c0_i32_0 = arith.constant 0 : i32
    %c0_i32_1 = arith.constant 0 : i32
    return %c0_i32, %c0_i32_0 : i32, i32
  }
  func.func @transform_7(%arg0: i32) -> (i32, i32) {
    %c0_i32 = arith.constant 0 : i32
    %c0_i32_0 = arith.constant 0 : i32
    %c0_i32_1 = arith.constant 0 : i32
    return %c0_i32, %c0_i32_0 : i32, i32
  }
  func.func @transform_8(%arg0: i32) -> (i32, i32) {
    %c0_i32 = arith.constant 0 : i32
    %c0_i32_0 = arith.constant 0 : i32
    return %c0_i32, %arg0 : i32, i32
  }
}

</mosaic_0001>

<llo_original>
// kernel: tpu_custom_call.1
$region0: #{tpu_custom_call.1}
  #allocation0 [shape = 'u32[]', space=smem, size = 0x4, offset = 0x4, fixed_abs, tag = 'smem constant byte address 0x4 - core index']
  #allocation1 [shape = 'u32[144,128]{1,0:T(1,128)}', space=vmem, size = 0x12000, scoped, tag = 'internal scratch']
  %s0 = inlined_call_operand.hbm [shape: bf16[32,512], index: 0, kind: input, shape index: {}]
  %s1 = inlined_call_operand.vmem [shape: bf16[32,32], index: 1, kind: input, shape index: {}]
  %s2 = inlined_call_operand.hbm [shape: bf16[256,256], index: 2, kind: input, shape index: {}]
  %s3 = inlined_call_operand.hbm [shape: bf16[256,256], index: 3, kind: input, shape index: {}]
  %s4 = inlined_call_operand.vmem [shape: f32[32,1], index: 4, kind: input, shape index: {}]
  %s5 = inlined_call_operand.vmem [shape: f32[1,256], index: 5, kind: input, shape index: {}]
  %s6 = inlined_call_operand.vmem [shape: f32[1,256], index: 6, kind: input, shape index: {}]
  %s7 = inlined_call_operand.vmem [shape: f32[1,256], index: 7, kind: input, shape index: {}]
  %s8 = inlined_call_operand.hbm [shape: f32[32,512], index: 8, kind: output, shape index: {}]
  %s9 = sld [smem:[#allocation0]]
  $region77: #{tpu_custom_call.1} parent=0
    _
  %s11 = ssub.s32 1, %s9
  %s12 = scalar_select 0, %s11, %s9
  $region1: #{tpu_custom_call.1} parent=0
    #allocation2 [shape = 'u8[32768]{0}', space=vmem, size = 0x8000, scoped, tag = 'input window, operand 0']
    #allocation3 [shape = 's32[2]{0}', space=sflag, size = 0x8, scoped, tag = 'scoped memory for tpu_custom_call.1']
    #allocation4 [shape = 's32[2]{0}', space=sflag, size = 0x8, scoped, tag = 'scoped memory for tpu_custom_call.1']
    #allocation5 [shape = 'u8[131072]{0}', space=vmem, size = 0x20000, scoped, tag = 'input window, operand 2, single buffered']
    #allocation6 [shape = 's32[1]{0}', space=sflag, size = 0x4, scoped, tag = 'scoped memory for tpu_custom_call.1']
    #allocation7 [shape = 'u8[131072]{0}', space=vmem, size = 0x20000, scoped, tag = 'input window, operand 3, single buffered']
    #allocation8 [shape = 'u8[65536]{0}', space=vmem, size = 0x10000, scoped, tag = 'output window, operand 0']
    %13 = vsyncpa [#allocation3], 0
    %s14 = scalar_lea.sflag [#allocation3], 1
    %15 = vsyncpa %s14, 0
    %16 = vsyncpa [#allocation6], 0
    %17 = vsyncpa [#allocation4], 0
    %s18 = scalar_lea.sflag [#allocation4], 1
    %19 = vsyncpa %s18, 0
    loop: start=0, step=1, limit=4
    $region2: #{tpu_custom_call.1} parent=1 // loop_pre_header
      _
    $region3: #{tpu_custom_call.1} parent=1 // loop_header
      %s21 = sphi 0, %s25
      %p22 = scmp.ge.s32.totalorder %s21, 4
      %s31 = sphi 0, %s33
      %s34 = sphi 0, %s31
      %s35 = sphi 0, %s34
      %s51 = sphi 0, %s35
      %s55 = sphi 0, %s55
      %s57 = sphi 0, %s55
      %s58 = sphi 0, %s57
      %s72 = sphi 0, %s58
      %s76 = sphi 0, %s76
      %s78 = sphi 0, %s76
      %s79 = sphi 0, %s78
      %s93 = sphi 0, %s79
      %s97 = sphi 0, %s97
      %s99 = sphi 0, %s97
      %s100 = sphi 0, %s99
      %s114 = sphi 0, %s100
      %s118 = sphi 0, %s118
      %s120 = sphi 0, %s118
      %s121 = sphi 0, %s120
      %s135 = sphi 0, %s121
      %s139 = sphi 0, %s139
      %s141 = sphi 0, %s139
      %s142 = sphi 0, %s141
      %s156 = sphi 0, %s142
      %s160 = sphi 0, %s160
      %s162 = sphi 0, %s160
      %s163 = sphi 0, %s162
      %s177 = sphi 0, %s163
      %s181 = sphi 0, %s181
      %s183 = sphi 0, %s181
      %s184 = sphi 0, %s183
      %s198 = sphi 0, %s184
      %s204 = sphi 0, %s206
      %s207 = sphi 0, %s204
      %s208 = sphi 0, %s207
      %s224 = sphi 0, %s208
    $region4: #{tpu_custom_call.1} parent=1 // loop_header_branch
      %24 = sbr.rel (%p22) target = $region8
    $region5: #{tpu_custom_call.1} parent=1 // loop_body
      %s26 = ssub.s32 %s21, 1
      %s27 = ssub.s32 %s21, 2
      %s28 = sadd.s32 %s21, 1
      %s29 = ssub.s32 %s21, %s28
      %p30 = scmp.eq.s32.totalorder %s29, 0
      %s32 = sadd.s32 %s31, 1
      %s33 = scalar_select %p30, %s31, %s32
      %p36 = pneg %p30
      %p37 = scmp.eq.s32.totalorder %s21, 1
      %p38 = por %p36, %p37
      %p39 = scmp.ne.s32.totalorder %s31, %s34
      %p40 = scmp.eq.s32.totalorder %s21, 0
      %p41 = por %p39, %p40
      %p42 = scmp.ne.s32.totalorder %s31, %s34
      %p43 = scmp.eq.s32.totalorder %s26, 1
      %p44 = por %p42, %p43
      %p45 = scmp.ne.s32.totalorder %s34, %s35
      %p46 = scmp.eq.s32.totalorder %s26, 0
      %p47 = por %p45, %p46
      %p48 = scmp.ne.s32.totalorder %s34, %s35
      %p49 = scmp.eq.s32.totalorder %s27, 1
      %p50 = por %p48, %p49
      %p52 = scmp.ne.s32.totalorder %s35, %s51
      %p53 = scmp.eq.s32.totalorder %s27, 0
      %p54 = por %p52, %p53
      %s56 = sadd.s32 %s55, 1
      %p59 = scmp.eq.s32.totalorder %s21, 1
      %p60 = scmp.ne.s32.totalorder %s55, %s57
      %p61 = scmp.eq.s32.totalorder %s21, 0
      %p62 = por %p60, %p61
      %p63 = scmp.ne.s32.totalorder %s55, %s57
      %p64 = scmp.eq.s32.totalorder %s26, 1
      %p65 = por %p63, %p64
      %p66 = scmp.ne.s32.totalorder %s57, %s58
      %p67 = scmp.eq.s32.totalorder %s26, 0
      %p68 = por %p66, %p67
      %p69 = scmp.ne.s32.totalorder %s57, %s58
      %p70 = scmp.eq.s32.totalorder %s27, 1
      %p71 = por %p69, %p70
      %p73 = scmp.ne.s32.totalorder %s58, %s72
      %p74 = scmp.eq.s32.totalorder %s27, 0
      %p75 = por %p73, %p74
      %s77 = sadd.s32 %s76, 1
      %p80 = scmp.eq.s32.totalorder %s21, 1
      %p81 = scmp.ne.s32.totalorder %s76, %s78
      %p82 = scmp.eq.s32.totalorder %s21, 0
      %p83 = por %p81, %p82
      %p84 = scmp.ne.s32.totalorder %s76, %s78
      %p85 = scmp.eq.s32.totalorder %s26, 1
      %p86 = por %p84, %p85
      %p87 = scmp.ne.s32.totalorder %s78, %s79
      %p88 = scmp.eq.s32.totalorder %s26, 0
      %p89 = por %p87, %p88
      %p90 = scmp.ne.s32.totalorder %s78, %s79
      %p91 = scmp.eq.s32.totalorder %s27, 1
      %p92 = por %p90, %p91
      %p94 = scmp.ne.s32.totalorder %s79, %s93
      %p95 = scmp.eq.s32.totalorder %s27, 0
      %p96 = por %p94, %p95
      %s98 = sadd.s32 %s97, 1
      %p101 = scmp.eq.s32.totalorder %s21, 1
      %p102 = scmp.ne.s32.totalorder %s97, %s99
      %p103 = scmp.eq.s32.totalorder %s21, 0
      %p104 = por %p102, %p103
      %p105 = scmp.ne.s32.totalorder %s97, %s99
      %p106 = scmp.eq.s32.totalorder %s26, 1
      %p107 = por %p105, %p106
      %p108 = scmp.ne.s32.totalorder %s99, %s100
      %p109 = scmp.eq.s32.totalorder %s26, 0
      %p110 = por %p108, %p109
      %p111 = scmp.ne.s32.totalorder %s99, %s100
      %p112 = scmp.eq.s32.totalorder %s27, 1
      %p113 = por %p111, %p112
      %p115 = scmp.ne.s32.totalorder %s100, %s114
      %p116 = scmp.eq.s32.totalorder %s27, 0
      %p117 = por %p115, %p116
      %s119 = sadd.s32 %s118, 1
      %p122 = scmp.eq.s32.totalorder %s21, 1
      %p123 = scmp.ne.s32.totalorder %s118, %s120
      %p124 = scmp.eq.s32.totalorder %s21, 0
      %p125 = por %p123, %p124
      %p126 = scmp.ne.s32.totalorder %s118, %s120
      %p127 = scmp.eq.s32.totalorder %s26, 1
      %p128 = por %p126, %p127
      %p129 = scmp.ne.s32.totalorder %s120, %s121
      %p130 = scmp.eq.s32.totalorder %s26, 0
      %p131 = por %p129, %p130
      %p132 = scmp.ne.s32.totalorder %s120, %s121
      %p133 = scmp.eq.s32.totalorder %s27, 1
      %p134 = por %p132, %p133
      %p136 = scmp.ne.s32.totalorder %s121, %s135
      %p137 = scmp.eq.s32.totalorder %s27, 0
      %p138 = por %p136, %p137
      %s140 = sadd.s32 %s139, 1
      %p143 = scmp.eq.s32.totalorder %s21, 1
      %p144 = scmp.ne.s32.totalorder %s139, %s141
      %p145 = scmp.eq.s32.totalorder %s21, 0
      %p146 = por %p144, %p145
      %p147 = scmp.ne.s32.totalorder %s139, %s141
      %p148 = scmp.eq.s32.totalorder %s26, 1
      %p149 = por %p147, %p148
      %p150 = scmp.ne.s32.totalorder %s141, %s142
      %p151 = scmp.eq.s32.totalorder %s26, 0
      %p152 = por %p150, %p151
      %p153 = scmp.ne.s32.totalorder %s141, %s142
      %p154 = scmp.eq.s32.totalorder %s27, 1
      %p155 = por %p153, %p154
      %p157 = scmp.ne.s32.totalorder %s142, %s156
      %p158 = scmp.eq.s32.totalorder %s27, 0
      %p159 = por %p157, %p158
      %s161 = sadd.s32 %s160, 1
      %p164 = scmp.eq.s32.totalorder %s21, 1
      %p165 = scmp.ne.s32.totalorder %s160, %s162
      %p166 = scmp.eq.s32.totalorder %s21, 0
      %p167 = por %p165, %p166
      %p168 = scmp.ne.s32.totalorder %s160, %s162
      %p169 = scmp.eq.s32.totalorder %s26, 1
      %p170 = por %p168, %p169
      %p171 = scmp.ne.s32.totalorder %s162, %s163
      %p172 = scmp.eq.s32.totalorder %s26, 0
      %p173 = por %p171, %p172
      %p174 = scmp.ne.s32.totalorder %s162, %s163
      %p175 = scmp.eq.s32.totalorder %s27, 1
      %p176 = por %p174, %p175
      %p178 = scmp.ne.s32.totalorder %s163, %s177
      %p179 = scmp.eq.s32.totalorder %s27, 0
      %p180 = por %p178, %p179
      %s182 = sadd.s32 %s181, 1
      %p185 = scmp.eq.s32.totalorder %s21, 1
      %p186 = scmp.ne.s32.totalorder %s181, %s183
      %p187 = scmp.eq.s32.totalorder %s21, 0
      %p188 = por %p186, %p187
      %p189 = scmp.ne.s32.totalorder %s181, %s183
      %p190 = scmp.eq.s32.totalorder %s26, 1
      %p191 = por %p189, %p190
      %p192 = scmp.ne.s32.totalorder %s183, %s184
      %p193 = scmp.eq.s32.totalorder %s26, 0
      %p194 = por %p192, %p193
      %p195 = scmp.ne.s32.totalorder %s183, %s184
      %p196 = scmp.eq.s32.totalorder %s27, 1
      %p197 = por %p195, %p196
      %p199 = scmp.ne.s32.totalorder %s184, %s198
      %p200 = scmp.eq.s32.totalorder %s27, 0
      %p201 = por %p199, %p200
      %s202 = ssub.s32 %s21, %s28
      %p203 = scmp.eq.s32.totalorder %s202, 0
      %s205 = sadd.s32 %s204, 1
      %s206 = scalar_select %p203, %s204, %s205
      %p209 = pneg %p203
      %p210 = scmp.eq.s32.totalorder %s21, 1
      %p211 = por %p209, %p210
      %p212 = scmp.ne.s32.totalorder %s204, %s207
      %p213 = scmp.eq.s32.totalorder %s21, 0
      %p214 = por %p212, %p213
      %p215 = scmp.ne.s32.totalorder %s204, %s207
      %p216 = scmp.eq.s32.totalorder %s26, 1
      %p217 = por %p215, %p216
      %p218 = scmp.ne.s32.totalorder %s207, %s208
      %p219 = scmp.eq.s32.totalorder %s26, 0
      %p220 = por %p218, %p219
      %p221 = scmp.ne.s32.totalorder %s207, %s208
      %p222 = scmp.eq.s32.totalorder %s27, 1
      %p223 = por %p221, %p222
      %p225 = scmp.ne.s32.totalorder %s208, %s224
      %p226 = scmp.eq.s32.totalorder %s27, 0
      %p227 = por %p225, %p226
      %p228 = scmp.le.s32.totalorder 1, %s21
      %p229 = scmp.lt.s32.totalorder %s21, 3
      %p230 = pnand %p228, %p229
      %p231 = pneg %p230
      // Predicated region
      $region9: #{tpu_custom_call.1} parent=5 // pred_check
        _
      $region10: #{tpu_custom_call.1} parent=5 // pred_check_branch
        %233 = sbr.rel (%p230) target = $region12
      $region11: #{tpu_custom_call.1} parent=5 // pred_region
        %s234 = ssub.s32 %s21, 1
        // Predicated region
        $region13: #{tpu_custom_call.1} parent=11 // pred_check
          %p235 = pneg %p68
        $region14: #{tpu_custom_call.1} parent=11 // pred_check_branch
          %237 = sbr.rel (%p235) target = $region16
        $region15: #{tpu_custom_call.1} parent=11 // pred_region
          _
        $region16: #{tpu_custom_call.1} parent=11 // pred_fallthru
          _
        // Predicated region
        $region17: #{tpu_custom_call.1} parent=11 // pred_check
          %p238 = pneg %p89
        $region18: #{tpu_custom_call.1} parent=11 // pred_check_branch
          %240 = sbr.rel (%p238) target = $region20
        $region19: #{tpu_custom_call.1} parent=11 // pred_region
          %s242 = ssub.s32 4096, 4096
          %243 = vsyncadd [#allocation6], %s242
          %s244 = sshll.u32 [#allocation5], 4
          %s245 = int_to_ptr.vmem [resolvable:$true] %s244
          %250 = dma.hbm_to_vmem [thread:$0]  %s2, 4096, %s245, [#allocation6], 128, 128, 8
        $region20: #{tpu_custom_call.1} parent=11 // pred_fallthru
          _
        // Predicated region
        $region21: #{tpu_custom_call.1} parent=11 // pred_check
          %p251 = pneg %p110
        $region22: #{tpu_custom_call.1} parent=11 // pred_check_branch
          %253 = sbr.rel (%p251) target = $region24
        $region23: #{tpu_custom_call.1} parent=11 // pred_region
          %s255 = ssub.s32 4096, 4096
          %256 = vsyncadd [#allocation6], %s255
          %s257 = sshll.u32 [#allocation7], 4
          %s258 = int_to_ptr.vmem [resolvable:$true] %s257
          %263 = dma.hbm_to_vmem [thread:$0]  %s3, 4096, %s258, [#allocation6], 128, 128, 8
        $region24: #{tpu_custom_call.1} parent=11 // pred_fallthru
          _
        // Predicated region
        $region25: #{tpu_custom_call.1} parent=11 // pred_check
          %p264 = pneg %p131
        $region26: #{tpu_custom_call.1} parent=11 // pred_check_branch
          %266 = sbr.rel (%p264) target = $region28
        $region27: #{tpu_custom_call.1} parent=11 // pred_region
          _
        $region28: #{tpu_custom_call.1} parent=11 // pred_fallthru
          _
        // Predicated region
        $region29: #{tpu_custom_call.1} parent=11 // pred_check
          %p267 = pneg %p152
        $region30: #{tpu_custom_call.1} parent=11 // pred_check_branch
          %269 = sbr.rel (%p267) target = $region32
        $region31: #{tpu_custom_call.1} parent=11 // pred_region
          _
        $region32: #{tpu_custom_call.1} parent=11 // pred_fallthru
          _
        // Predicated region
        $region33: #{tpu_custom_call.1} parent=11 // pred_check
          %p270 = pneg %p173
        $region34: #{tpu_custom_call.1} parent=11 // pred_check_branch
          %272 = sbr.rel (%p270) target = $region36
        $region35: #{tpu_custom_call.1} parent=11 // pred_region
          _
        $region36: #{tpu_custom_call.1} parent=11 // pred_fallthru
          _
        // Predicated region
        $region37: #{tpu_custom_call.1} parent=11 // pred_check
          %p273 = pneg %p194
        $region38: #{tpu_custom_call.1} parent=11 // pred_check_branch
          %275 = sbr.rel (%p273) target = $region40
        $region39: #{tpu_custom_call.1} parent=11 // pred_region
          _
        $region40: #{tpu_custom_call.1} parent=11 // pred_fallthru
          _
      $region12: #{tpu_custom_call.1} parent=5 // pred_fallthru
        _
      %p276 = scmp.lt.s32.totalorder %s21, 2
      // Predicated region
      $region41: #{tpu_custom_call.1} parent=5 // pred_check
        %p277 = pneg %p276
      $region42: #{tpu_custom_call.1} parent=5 // pred_check_branch
        %279 = sbr.rel (%p277) target = $region44
      $region43: #{tpu_custom_call.1} parent=5 // pred_region
        // Predicated region
        $region45: #{tpu_custom_call.1} parent=43 // pred_check
          %p280 = pneg %p41
        $region46: #{tpu_custom_call.1} parent=43 // pred_check_branch
          %282 = sbr.rel (%p280) target = $region48
        $region47: #{tpu_custom_call.1} parent=43 // pred_region
          %s283 = sand.u32 %s31, 1
          %s284 = scalar_lea.sflag [#allocation3], %s283
          %s285 = sand.u32 %s31, 1
          %s286 = smul.addr %s285, 32
          %s287 = scalar_lea.vmem [#allocation2], %s286
          %s288 = smul.u32 2, %s21
          %s290 = ssub.s32 512, 512
          %291 = vsyncadd %s284, %s290
          %s292 = smul.addr %s288, 64
          %s293 = scalar_lea.hbm %s0, %s292
          %s294 = sshll.u32 %s287, 4
          %s295 = int_to_ptr.vmem [resolvable:$true] %s294
          %300 = dma.hbm_to_vmem [thread:$0]  %s293, 512, %s295, %s284, 256, 128, 8
        $region48: #{tpu_custom_call.1} parent=43 // pred_fallthru
          _
      $region44: #{tpu_custom_call.1} parent=5 // pred_fallthru
        _
      %p301 = scmp.le.s32.totalorder 1, %s21
      %p302 = scmp.lt.s32.totalorder %s21, 3
      %p303 = pnand %p301, %p302
      %p304 = pneg %p303
      // Predicated region
      $region49: #{tpu_custom_call.1} parent=5 // pred_check
        _
      $region50: #{tpu_custom_call.1} parent=5 // pred_check_branch
        %306 = sbr.rel (%p303) target = $region52
      $region51: #{tpu_custom_call.1} parent=5 // pred_region
        %s307 = ssub.s32 %s21, 1
        %s308 = sand.u32 %s34, 1
        %s309 = scalar_lea.sflag [#allocation3], %s308
        %s310 = sand.u32 %s34, 1
        %s311 = smul.addr %s310, 32
        %s312 = scalar_lea.vmem [#allocation2], %s311
        // Predicated region
        $region53: #{tpu_custom_call.1} parent=51 // pred_check
          %p313 = pneg %p47
        $region54: #{tpu_custom_call.1} parent=51 // pred_check_branch
          %315 = sbr.rel (%p313) target = $region56
        $region55: #{tpu_custom_call.1} parent=51 // pred_region
          %316 = dma.done %s309, 512
        $region56: #{tpu_custom_call.1} parent=51 // pred_fallthru
          _
        // Predicated region
        $region57: #{tpu_custom_call.1} parent=51 // pred_check
          %p317 = pneg %p89
        $region58: #{tpu_custom_call.1} parent=51 // pred_check_branch
          %319 = sbr.rel (%p317) target = $region60
        $region59: #{tpu_custom_call.1} parent=51 // pred_region
          %320 = dma.done [#allocation6], 4096
        $region60: #{tpu_custom_call.1} parent=51 // pred_fallthru
          _
        // Predicated region
        $region61: #{tpu_custom_call.1} parent=51 // pred_check
          %p321 = pneg %p110
        $region62: #{tpu_custom_call.1} parent=51 // pred_check_branch
          %323 = sbr.rel (%p321) target = $region64
        $region63: #{tpu_custom_call.1} parent=51 // pred_region
          %324 = dma.done [#allocation6], 4096
        $region64: #{tpu_custom_call.1} parent=51 // pred_fallthru
          _
        %s325 = sand.u32 %s34, 1
        %s326 = scalar_lea.sflag [#allocation3], %s325
        %s327 = sand.u32 %s34, 1
        %s328 = smul.addr %s327, 32
        %s329 = scalar_lea.vmem [#allocation2], %s328
        %p330 = pneg %p47
        %p331 = pneg %p44
        %p332 = pneg %p68
        %p333 = pneg %p65
        %p334 = pneg %p89
        %p335 = pneg %p86
        %p336 = pneg %p110
        %p337 = pneg %p107
        %p338 = pneg %p131
        %p339 = pneg %p128
        %p340 = pneg %p152
        %p341 = pneg %p149
        %p342 = pneg %p173
        %p343 = pneg %p170
        %p344 = pneg %p194
        %p345 = pneg %p191
        %p346 = pneg %p220
        %p347 = pneg %p217
        %s348 = sand.u32 %s207, 1
        %s349 = scalar_lea.sflag [#allocation4], %s348
        %s350 = sand.u32 %s207, 1
        %s351 = smul.addr %s350, 64
        %s352 = scalar_lea.vmem [#allocation8], %s351
        %s353 = smul.u32 2, %s26
        %s354 = smul.u32 2, %s26
        %v356 = vld [vmem:[%s312] sm:$0xff]
        %v357 = vld [vmem:[%s312 + $0x8] sm:$0xff]
        %v358 = vld [vmem:[%s312 + $0x10] sm:$0xff]
        %v359 = vld [vmem:[%s312 + $0x18] sm:$0xff]
        %v360 = vld [vmem:[%s1] sm:$0xf]
        %v361 = vld [vmem:[%s1 + $0x4] sm:$0xf]
        %v362 = vld [vmem:[%s1 + $0x8] sm:$0xf]
        %v363 = vld [vmem:[%s1 + $0xc] sm:$0xf]
        %v368 = vunpack.c.l.b16 %v360
        %v369 = vunpack.c.l.b16 %v361
        %v370 = vunpack.c.l.b16 %v362
        %v371 = vunpack.c.l.b16 %v363
        %v372 = vpack.c.b16 %v369, %v368
        %v373 = vpack.c.b16 %v371, %v370
        %v378 = vunpack.c.l.b16 %v356
        %v379 = vunpack.c.h.b16 %v356
        %v380 = vunpack.c.l.b16 %v357
        %v381 = vunpack.c.h.b16 %v357
        %v382 = vunpack.c.l.b16 %v358
        %v383 = vunpack.c.h.b16 %v358
        %v384 = vunpack.c.l.b16 %v359
        %v385 = vunpack.c.h.b16 %v359
        %v386 = vpack.c.b16 %v380, %v378
        %v387 = vpack.c.b16 %v381, %v379
        %v388 = vpack.c.b16 %v384, %v382
        %v389 = vpack.c.b16 %v385, %v383
        %vm394 = vcmask 261120
        %v396 = vsel %vm394, %v372, 0
        %v399 = vsel %vm394, %v373, 0
        %401 = vmatprep.subr.bf16.mxu0 0
        %402 = vmatpush1.bf16.msra.mxu0 0
        %403 = vmatprep.subr.bf16.mxu0 0
        %404 = vmatpush1.bf16.msra.mxu0 0
        %405 = vmatprep.subr.bf16.mxu0 0
        %406 = vmatpush1.bf16.msra.mxu0 0
        %407 = vmatprep.subr.bf16.mxu0 0
        %408 = vmatpush1.bf16.msra.mxu0 0
        %409 = vmatprep.subr.bf16.mxu0 0
        %410 = vmatpush1.bf16.msra.mxu0 0
        %411 = vmatprep.subr.bf16.mxu0 0
        %412 = vmatpush1.bf16.msra.mxu0 0
        %413 = vmatprep.subr.bf16.mxu0 %v389
        %414 = vmatpush1.bf16.msra.mxu0 %v388
        %415 = vmatprep.subr.bf16.mxu0 %v387
        %416 = vmatpush1.bf16.msra.mxu0 %v386
        %417 = vmatprep.subr.bf16.mxu0 0
        %418 = vmatpush2.bf16.msra.mxu0 0
        %419 = vmatprep.subr.bf16.mxu0 0
        %420 = vmatpush2.bf16.msra.mxu0 0
        %421 = vmatprep.subr.bf16.mxu0 0
        %422 = vmatpush2.bf16.msra.mxu0 0
        %423 = vmatprep.subr.bf16.mxu0 0
        %424 = vmatpush2.bf16.msra.mxu0 0
        %425 = vmatprep.subr.bf16.mxu0 0
        %426 = vmatpush2.bf16.msra.mxu0 0
        %427 = vmatprep.subr.bf16.mxu0 0
        %428 = vmatpush2.bf16.msra.mxu0 0
        %429 = vmatprep.subr.bf16.mxu0 0
        %430 = vmatpush2.bf16.msra.mxu0 0
        %431 = vmatprep.subr.bf16.mxu0 0
        %432 = vmatpush2.bf16.msra.mxu0 0
        %433 = vmatprep.mubr.bf16.mxu0 0
        %434 = vmatmul.mubr.bf16.gmra.mxu0 %v396
        %v435 = vpop.f32.mrf.mxu0
        %v436 = vadd.f32 0.0, %v435
        %v437 = vpop.f32.mrf.mxu0
        %v438 = vadd.f32 0.0, %v437
        %v439 = vpop.f32.mrf.mxu0
        %v440 = vadd.f32 0.0, %v439
        %v441 = vpop.f32.mrf.mxu0
        %v442 = vadd.f32 0.0, %v441
        %443 = vmatprep.mubr.bf16.mxu0 0
        %444 = vmatmul.mubr.bf16.gmra.mxu0 %v399
        %v445 = vpop.f32.mrf.mxu0
        %v446 = vadd.f32 0.0, %v445
        %v447 = vpop.f32.mrf.mxu0
        %v448 = vadd.f32 0.0, %v447
        %v449 = vpop.f32.mrf.mxu0
        %v450 = vadd.f32 0.0, %v449
        %v451 = vpop.f32.mrf.mxu0
        %v452 = vadd.f32 0.0, %v451
        %453 = vdwg.mxu0
        %v454 = vmul.f32 %v436, 0.04
        %v455 = vmul.f32 %v438, 0.04
        %v456 = vmul.f32 %v440, 0.04
        %v457 = vmul.f32 %v442, 0.04
        %v458 = vmul.f32 %v446, 0.04
        %v459 = vmul.f32 %v448, 0.04
        %v460 = vmul.f32 %v450, 0.04
        %v461 = vmul.f32 %v452, 0.04
        %v462 = vunpack.c.l.bf16 %v356
        %v463 = vunpack.c.h.bf16 %v356
        %v464 = vunpack.c.l.bf16 %v357
        %v465 = vunpack.c.h.bf16 %v357
        %v466 = vunpack.c.l.bf16 %v358
        %v467 = vunpack.c.h.bf16 %v358
        %v468 = vunpack.c.l.bf16 %v359
        %v469 = vunpack.c.h.bf16 %v359
        %v470 = vsub.f32 %v462, %v454
        %v471 = vsub.f32 %v463, %v455
        %v472 = vsub.f32 %v464, %v456
        %v473 = vsub.f32 %v465, %v457
        %v474 = vsub.f32 %v466, %v458
        %v475 = vsub.f32 %v467, %v459
        %v476 = vsub.f32 %v468, %v460
        %v477 = vsub.f32 %v469, %v461
        %v478 = vpack.c.bf16 %v472, %v470
        %v479 = vpack.c.bf16 %v473, %v471
        %v480 = vpack.c.bf16 %v476, %v474
        %v481 = vpack.c.bf16 %v477, %v475
        %v482 = vld [vmem:[#allocation5] sm:$0xff]
        %v483 = vld [vmem:[#allocation5 + $0x8] sm:$0xff]
        %v484 = vld [vmem:[#allocation5 + $0x10] sm:$0xff]
        %v485 = vld [vmem:[#allocation5 + $0x18] sm:$0xff]
        %v486 = vld [vmem:[#allocation5 + $0x20] sm:$0xff]
        %v487 = vld [vmem:[#allocation5 + $0x28] sm:$0xff]
        %v488 = vld [vmem:[#allocation5 + $0x30] sm:$0xff]
        %v489 = vld [vmem:[#allocation5 + $0x38] sm:$0xff]
        %v490 = vld [vmem:[#allocation5 + $0x40] sm:$0xff]
        %v491 = vld [vmem:[#allocation5 + $0x48] sm:$0xff]
        %v492 = vld [vmem:[#allocation5 + $0x50] sm:$0xff]
        %v493 = vld [vmem:[#allocation5 + $0x58] sm:$0xff]
        %v494 = vld [vmem:[#allocation5 + $0x60] sm:$0xff]
        %v495 = vld [vmem:[#allocation5 + $0x68] sm:$0xff]
        %v496 = vld [vmem:[#allocation5 + $0x70] sm:$0xff]
        %v497 = vld [vmem:[#allocation5 + $0x78] sm:$0xff]
        %v498 = vld [vmem:[#allocation5 + $0x80] sm:$0xff]
        %v499 = vld [vmem:[#allocation5 + $0x88] sm:$0xff]
        %v500 = vld [vmem:[#allocation5 + $0x90] sm:$0xff]
        %v501 = vld [vmem:[#allocation5 + $0x98] sm:$0xff]
        %v502 = vld [vmem:[#allocation5 + $0xa0] sm:$0xff]
        %v503 = vld [vmem:[#allocation5 + $0xa8] sm:$0xff]
        %v504 = vld [vmem:[#allocation5 + $0xb0] sm:$0xff]
        %v505 = vld [vmem:[#allocation5 + $0xb8] sm:$0xff]
        %v506 = vld [vmem:[#allocation5 + $0xc0] sm:$0xff]
        %v507 = vld [vmem:[#allocation5 + $0xc8] sm:$0xff]
        %v508 = vld [vmem:[#allocation5 + $0xd0] sm:$0xff]
        %v509 = vld [vmem:[#allocation5 + $0xd8] sm:$0xff]
        %v510 = vld [vmem:[#allocation5 + $0xe0] sm:$0xff]
        %v511 = vld [vmem:[#allocation5 + $0xe8] sm:$0xff]
        %v512 = vld [vmem:[#allocation5 + $0xf0] sm:$0xff]
        %v513 = vld [vmem:[#allocation5 + $0xf8] sm:$0xff]
        %v546 = vunpack.c.l.b16 %v482
        %v547 = vunpack.c.h.b16 %v482
        %v548 = vunpack.c.l.b16 %v483
        %v549 = vunpack.c.h.b16 %v483
        %v550 = vunpack.c.l.b16 %v484
        %v551 = vunpack.c.h.b16 %v484
        %v552 = vunpack.c.l.b16 %v485
        %v553 = vunpack.c.h.b16 %v485
        %v554 = vunpack.c.l.b16 %v486
        %v555 = vunpack.c.h.b16 %v486
        %v556 = vunpack.c.l.b16 %v487
        %v557 = vunpack.c.h.b16 %v487
        %v558 = vunpack.c.l.b16 %v488
        %v559 = vunpack.c.h.b16 %v488
        %v560 = vunpack.c.l.b16 %v489
        %v561 = vunpack.c.h.b16 %v489
        %v562 = vunpack.c.l.b16 %v490
        %v563 = vunpack.c.h.b16 %v490
        %v564 = vunpack.c.l.b16 %v491
        %v565 = vunpack.c.h.b16 %v491
        %v566 = vunpack.c.l.b16 %v492
        %v567 = vunpack.c.h.b16 %v492
        %v568 = vunpack.c.l.b16 %v493
        %v569 = vunpack.c.h.b16 %v493
        %v570 = vunpack.c.l.b16 %v494
        %v571 = vunpack.c.h.b16 %v494
        %v572 = vunpack.c.l.b16 %v495
        %v573 = vunpack.c.h.b16 %v495
        %v574 = vunpack.c.l.b16 %v496
        %v575 = vunpack.c.h.b16 %v496
        %v576 = vunpack.c.l.b16 %v497
        %v577 = vunpack.c.h.b16 %v497
        %v578 = vunpack.c.l.b16 %v498
        %v579 = vunpack.c.h.b16 %v498
        %v580 = vunpack.c.l.b16 %v499
        %v581 = vunpack.c.h.b16 %v499
        %v582 = vunpack.c.l.b16 %v500
        %v583 = vunpack.c.h.b16 %v500
        %v584 = vunpack.c.l.b16 %v501
        %v585 = vunpack.c.h.b16 %v501
        %v586 = vunpack.c.l.b16 %v502
        %v587 = vunpack.c.h.b16 %v502
        %v588 = vunpack.c.l.b16 %v503
        %v589 = vunpack.c.h.b16 %v503
        %v590 = vunpack.c.l.b16 %v504
        %v591 = vunpack.c.h.b16 %v504
        %v592 = vunpack.c.l.b16 %v505
        %v593 = vunpack.c.h.b16 %v505
        %v594 = vunpack.c.l.b16 %v506
        %v595 = vunpack.c.h.b16 %v506
        %v596 = vunpack.c.l.b16 %v507
        %v597 = vunpack.c.h.b16 %v507
        %v598 = vunpack.c.l.b16 %v508
        %v599 = vunpack.c.h.b16 %v508
        %v600 = vunpack.c.l.b16 %v509
        %v601 = vunpack.c.h.b16 %v509
        %v602 = vunpack.c.l.b16 %v510
        %v603 = vunpack.c.h.b16 %v510
        %v604 = vunpack.c.l.b16 %v511
        %v605 = vunpack.c.h.b16 %v511
        %v606 = vunpack.c.l.b16 %v512
        %v607 = vunpack.c.h.b16 %v512
        %v608 = vunpack.c.l.b16 %v513
        %v609 = vunpack.c.h.b16 %v513
        %v610 = vpack.c.b16 %v548, %v546
        %v611 = vpack.c.b16 %v549, %v547
        %v612 = vpack.c.b16 %v552, %v550
        %v613 = vpack.c.b16 %v553, %v551
        %v614 = vpack.c.b16 %v556, %v554
        %v615 = vpack.c.b16 %v557, %v555
        %v616 = vpack.c.b16 %v560, %v558
        %v617 = vpack.c.b16 %v561, %v559
        %v618 = vpack.c.b16 %v564, %v562
        %v619 = vpack.c.b16 %v565, %v563
        %v620 = vpack.c.b16 %v568, %v566
        %v621 = vpack.c.b16 %v569, %v567
        %v622 = vpack.c.b16 %v572, %v570
        %v623 = vpack.c.b16 %v573, %v571
        %v624 = vpack.c.b16 %v576, %v574
        %v625 = vpack.c.b16 %v577, %v575
        %v626 = vpack.c.b16 %v580, %v578
        %v627 = vpack.c.b16 %v581, %v579
        %v628 = vpack.c.b16 %v584, %v582
        %v629 = vpack.c.b16 %v585, %v583
        %v630 = vpack.c.b16 %v588, %v586
        %v631 = vpack.c.b16 %v589, %v587
        %v632 = vpack.c.b16 %v592, %v590
        %v633 = vpack.c.b16 %v593, %v591
        %v634 = vpack.c.b16 %v596, %v594
        %v635 = vpack.c.b16 %v597, %v595
        %v636 = vpack.c.b16 %v600, %v598
        %v637 = vpack.c.b16 %v601, %v599
        %v638 = vpack.c.b16 %v604, %v602
        %v639 = vpack.c.b16 %v605, %v603
        %v640 = vpack.c.b16 %v608, %v606
        %v641 = vpack.c.b16 %v609, %v607
        %674 = vmatprep.subr.bf16.mxu0 %v625
        %675 = vmatpush1.bf16.msra.mxu0 %v624
        %676 = vmatprep.subr.bf16.mxu0 %v623
        %677 = vmatpush1.bf16.msra.mxu0 %v622
        %678 = vmatprep.subr.bf16.mxu0 %v621
        %679 = vmatpush1.bf16.msra.mxu0 %v620
        %680 = vmatprep.subr.bf16.mxu0 %v619
        %681 = vmatpush1.bf16.msra.mxu0 %v618
        %682 = vmatprep.subr.bf16.mxu0 %v617
        %683 = vmatpush1.bf16.msra.mxu0 %v616
        %684 = vmatprep.subr.bf16.mxu0 %v615
        %685 = vmatpush1.bf16.msra.mxu0 %v614
        %686 = vmatprep.subr.bf16.mxu0 %v613
        %687 = vmatpush1.bf16.msra.mxu0 %v612
        %688 = vmatprep.subr.bf16.mxu0 %v611
        %689 = vmatpush1.bf16.msra.mxu0 %v610
        %690 = vmatprep.subr.bf16.mxu0 %v641
        %691 = vmatpush2.bf16.msra.mxu0 %v640
        %692 = vmatprep.subr.bf16.mxu0 %v639
        %693 = vmatpush2.bf16.msra.mxu0 %v638
        %694 = vmatprep.subr.bf16.mxu0 %v637
        %695 = vmatpush2.bf16.msra.mxu0 %v636
        %696 = vmatprep.subr.bf16.mxu0 %v635
        %697 = vmatpush2.bf16.msra.mxu0 %v634
        %698 = vmatprep.subr.bf16.mxu0 %v633
        %699 = vmatpush2.bf16.msra.mxu0 %v632
        %700 = vmatprep.subr.bf16.mxu0 %v631
        %701 = vmatpush2.bf16.msra.mxu0 %v630
        %702 = vmatprep.subr.bf16.mxu0 %v629
        %703 = vmatpush2.bf16.msra.mxu0 %v628
        %704 = vmatprep.subr.bf16.mxu0 %v627
        %705 = vmatpush2.bf16.msra.mxu0 %v626
        %706 = vmatprep.mubr.bf16.mxu0 %v479
        %707 = vmatmul.mubr.bf16.gmra.mxu0 %v478
        %v708 = vpop.f32.mrf.mxu0
        %v709 = vadd.f32 %v454, %v708
        %v710 = vpop.f32.mrf.mxu0
        %v711 = vadd.f32 %v455, %v710
        %v712 = vpop.f32.mrf.mxu0
        %v713 = vadd.f32 %v456, %v712
        %v714 = vpop.f32.mrf.mxu0
        %v715 = vadd.f32 %v457, %v714
        %716 = vmatprep.mubr.bf16.mxu0 %v481
        %717 = vmatmul.mubr.bf16.gmra.mxu0 %v480
        %v718 = vpop.f32.mrf.mxu0
        %v719 = vadd.f32 %v458, %v718
        %v720 = vpop.f32.mrf.mxu0
        %v721 = vadd.f32 %v459, %v720
        %v722 = vpop.f32.mrf.mxu0
        %v723 = vadd.f32 %v460, %v722
        %v724 = vpop.f32.mrf.mxu0
        %v725 = vadd.f32 %v461, %v724
        %726 = vdwg.mxu0
        %v727 = vld [vmem:[%s4] sm:$0xff]
        %v728 = vld [vmem:[%s4 + $0x8] sm:$0xff]
        %v729 = vld [vmem:[%s4 + $0x10] sm:$0xff]
        %v730 = vld [vmem:[%s4 + $0x18] sm:$0xff]
        %v731 = vld [vmem:[%s5] sm:$0x3]
        %733 = vset.pattern.permute.xlu0 0
        %734 = vperm.xlu0 %733, %v727
        %v735 = vpop.permute.xlu0 %734
        %738 = vset.pattern.permute.xlu0 0
        %739 = vperm.xlu0 %738, %v728
        %v740 = vpop.permute.xlu0 %739
        %743 = vset.pattern.permute.xlu0 0
        %744 = vperm.xlu0 %743, %v729
        %v745 = vpop.permute.xlu0 %744
        %748 = vset.pattern.permute.xlu0 0
        %749 = vperm.xlu0 %748, %v730
        %v750 = vpop.permute.xlu0 %749
        %v753 = vlaneseq
        %v754 = vshrl.u32 %v753, 7
        %v755 = vsub.s32 0, %v754
        %v756 = vrot.slane %v731, %v755
        %v757 = vlaneseq
        %v758 = vshrl.u32 %v757, 7
        %v759 = vsub.s32 1, %v758
        %v760 = vrot.slane %v731, %v759
        %v763 = vmul.f32 %v735, %v756
        %v764 = vmul.f32 %v735, %v760
        %v765 = vmul.f32 %v740, %v756
        %v766 = vmul.f32 %v740, %v760
        %v767 = vmul.f32 %v745, %v756
        %v768 = vmul.f32 %v745, %v760
        %v769 = vmul.f32 %v750, %v756
        %v770 = vmul.f32 %v750, %v760
        %v771 = vadd.f32 %v709, %v763
        %v772 = vadd.f32 %v711, %v764
        %v773 = vadd.f32 %v713, %v765
        %v774 = vadd.f32 %v715, %v766
        %v775 = vadd.f32 %v719, %v767
        %v776 = vadd.f32 %v721, %v768
        %v777 = vadd.f32 %v723, %v769
        %v778 = vadd.f32 %v725, %v770
        %v779 = vpack.c.bf16 %v773, %v771
        %v780 = vpack.c.bf16 %v774, %v772
        %v781 = vpack.c.bf16 %v777, %v775
        %v782 = vpack.c.bf16 %v778, %v776
        %v783 = vmul.f32 %v771, %v771
        %v784 = vmul.f32 %v772, %v772
        %v785 = vmul.f32 %v773, %v773
        %v786 = vmul.f32 %v774, %v774
        %v787 = vmul.f32 %v775, %v775
        %v788 = vmul.f32 %v776, %v776
        %v789 = vmul.f32 %v777, %v777
        %v790 = vmul.f32 %v778, %v778
        %v791 = vpack.c.bf16 %v785, %v783
        %v792 = vpack.c.bf16 %v786, %v784
        %v793 = vpack.c.bf16 %v789, %v787
        %v794 = vpack.c.bf16 %v790, %v788
        %v795 = vld [vmem:[#allocation7] sm:$0xff]
        %v796 = vld [vmem:[#allocation7 + $0x8] sm:$0xff]
        %v797 = vld [vmem:[#allocation7 + $0x10] sm:$0xff]
        %v798 = vld [vmem:[#allocation7 + $0x18] sm:$0xff]
        %v799 = vld [vmem:[#allocation7 + $0x20] sm:$0xff]
        %v800 = vld [vmem:[#allocation7 + $0x28] sm:$0xff]
        %v801 = vld [vmem:[#allocation7 + $0x30] sm:$0xff]
        %v802 = vld [vmem:[#allocation7 + $0x38] sm:$0xff]
        %v803 = vld [vmem:[#allocation7 + $0x40] sm:$0xff]
        %v804 = vld [vmem:[#allocation7 + $0x48] sm:$0xff]
        %v805 = vld [vmem:[#allocation7 + $0x50] sm:$0xff]
        %v806 = vld [vmem:[#allocation7 + $0x58] sm:$0xff]
        %v807 = vld [vmem:[#allocation7 + $0x60] sm:$0xff]
        %v808 = vld [vmem:[#allocation7 + $0x68] sm:$0xff]
        %v809 = vld [vmem:[#allocation7 + $0x70] sm:$0xff]
        %v810 = vld [vmem:[#allocation7 + $0x78] sm:$0xff]
        %v811 = vld [vmem:[#allocation7 + $0x80] sm:$0xff]
        %v812 = vld [vmem:[#allocation7 + $0x88] sm:$0xff]
        %v813 = vld [vmem:[#allocation7 + $0x90] sm:$0xff]
        %v814 = vld [vmem:[#allocation7 + $0x98] sm:$0xff]
        %v815 = vld [vmem:[#allocation7 + $0xa0] sm:$0xff]
        %v816 = vld [vmem:[#allocation7 + $0xa8] sm:$0xff]
        %v817 = vld [vmem:[#allocation7 + $0xb0] sm:$0xff]
        %v818 = vld [vmem:[#allocation7 + $0xb8] sm:$0xff]
        %v819 = vld [vmem:[#allocation7 + $0xc0] sm:$0xff]
        %v820 = vld [vmem:[#allocation7 + $0xc8] sm:$0xff]
        %v821 = vld [vmem:[#allocation7 + $0xd0] sm:$0xff]
        %v822 = vld [vmem:[#allocation7 + $0xd8] sm:$0xff]
        %v823 = vld [vmem:[#allocation7 + $0xe0] sm:$0xff]
        %v824 = vld [vmem:[#allocation7 + $0xe8] sm:$0xff]
        %v825 = vld [vmem:[#allocation7 + $0xf0] sm:$0xff]
        %v826 = vld [vmem:[#allocation7 + $0xf8] sm:$0xff]
        %v859 = vunpack.c.l.b16 %v795
        %v860 = vunpack.c.h.b16 %v795
        %v861 = vunpack.c.l.b16 %v796
        %v862 = vunpack.c.h.b16 %v796
        %v863 = vunpack.c.l.b16 %v797
        %v864 = vunpack.c.h.b16 %v797
        %v865 = vunpack.c.l.b16 %v798
        %v866 = vunpack.c.h.b16 %v798
        %v867 = vunpack.c.l.b16 %v799
        %v868 = vunpack.c.h.b16 %v799
        %v869 = vunpack.c.l.b16 %v800
        %v870 = vunpack.c.h.b16 %v800
        %v871 = vunpack.c.l.b16 %v801
        %v872 = vunpack.c.h.b16 %v801
        %v873 = vunpack.c.l.b16 %v802
        %v874 = vunpack.c.h.b16 %v802
        %v875 = vunpack.c.l.b16 %v803
        %v876 = vunpack.c.h.b16 %v803
        %v877 = vunpack.c.l.b16 %v804
        %v878 = vunpack.c.h.b16 %v804
        %v879 = vunpack.c.l.b16 %v805
        %v880 = vunpack.c.h.b16 %v805
        %v881 = vunpack.c.l.b16 %v806
        %v882 = vunpack.c.h.b16 %v806
        %v883 = vunpack.c.l.b16 %v807
        %v884 = vunpack.c.h.b16 %v807
        %v885 = vunpack.c.l.b16 %v808
        %v886 = vunpack.c.h.b16 %v808
        %v887 = vunpack.c.l.b16 %v809
        %v888 = vunpack.c.h.b16 %v809
        %v889 = vunpack.c.l.b16 %v810
        %v890 = vunpack.c.h.b16 %v810
        %v891 = vunpack.c.l.b16 %v811
        %v892 = vunpack.c.h.b16 %v811
        %v893 = vunpack.c.l.b16 %v812
        %v894 = vunpack.c.h.b16 %v812
        %v895 = vunpack.c.l.b16 %v813
        %v896 = vunpack.c.h.b16 %v813
        %v897 = vunpack.c.l.b16 %v814
        %v898 = vunpack.c.h.b16 %v814
        %v899 = vunpack.c.l.b16 %v815
        %v900 = vunpack.c.h.b16 %v815
        %v901 = vunpack.c.l.b16 %v816
        %v902 = vunpack.c.h.b16 %v816
        %v903 = vunpack.c.l.b16 %v817
        %v904 = vunpack.c.h.b16 %v817
        %v905 = vunpack.c.l.b16 %v818
        %v906 = vunpack.c.h.b16 %v818
        %v907 = vunpack.c.l.b16 %v819
        %v908 = vunpack.c.h.b16 %v819
        %v909 = vunpack.c.l.b16 %v820
        %v910 = vunpack.c.h.b16 %v820
        %v911 = vunpack.c.l.b16 %v821
        %v912 = vunpack.c.h.b16 %v821
        %v913 = vunpack.c.l.b16 %v822
        %v914 = vunpack.c.h.b16 %v822
        %v915 = vunpack.c.l.b16 %v823
        %v916 = vunpack.c.h.b16 %v823
        %v917 = vunpack.c.l.b16 %v824
        %v918 = vunpack.c.h.b16 %v824
        %v919 = vunpack.c.l.b16 %v825
        %v920 = vunpack.c.h.b16 %v825
        %v921 = vunpack.c.l.b16 %v826
        %v922 = vunpack.c.h.b16 %v826
        %v923 = vpack.c.b16 %v861, %v859
        %v924 = vpack.c.b16 %v862, %v860
        %v925 = vpack.c.b16 %v865, %v863
        %v926 = vpack.c.b16 %v866, %v864
        %v927 = vpack.c.b16 %v869, %v867
        %v928 = vpack.c.b16 %v870, %v868
        %v929 = vpack.c.b16 %v873, %v871
        %v930 = vpack.c.b16 %v874, %v872
        %v931 = vpack.c.b16 %v877, %v875
        %v932 = vpack.c.b16 %v878, %v876
        %v933 = vpack.c.b16 %v881, %v879
        %v934 = vpack.c.b16 %v882, %v880
        %v935 = vpack.c.b16 %v885, %v883
        %v936 = vpack.c.b16 %v886, %v884
        %v937 = vpack.c.b16 %v889, %v887
        %v938 = vpack.c.b16 %v890, %v888
        %v939 = vpack.c.b16 %v893, %v891
        %v940 = vpack.c.b16 %v894, %v892
        %v941 = vpack.c.b16 %v897, %v895
        %v942 = vpack.c.b16 %v898, %v896
        %v943 = vpack.c.b16 %v901, %v899
        %v944 = vpack.c.b16 %v902, %v900
        %v945 = vpack.c.b16 %v905, %v903
        %v946 = vpack.c.b16 %v906, %v904
        %v947 = vpack.c.b16 %v909, %v907
        %v948 = vpack.c.b16 %v910, %v908
        %v949 = vpack.c.b16 %v913, %v911
        %v950 = vpack.c.b16 %v914, %v912
        %v951 = vpack.c.b16 %v917, %v915
        %v952 = vpack.c.b16 %v918, %v916
        %v953 = vpack.c.b16 %v921, %v919
        %v954 = vpack.c.b16 %v922, %v920
        %987 = vmatprep.subr.bf16.mxu0 %v938
        %988 = vmatpush1.bf16.msra.mxu0 %v937
        %989 = vmatprep.subr.bf16.mxu0 %v936
        %990 = vmatpush1.bf16.msra.mxu0 %v935
        %991 = vmatprep.subr.bf16.mxu0 %v934
        %992 = vmatpush1.bf16.msra.mxu0 %v933
        %993 = vmatprep.subr.bf16.mxu0 %v932
        %994 = vmatpush1.bf16.msra.mxu0 %v931
        %995 = vmatprep.subr.bf16.mxu0 %v930
        %996 = vmatpush1.bf16.msra.mxu0 %v929
        %997 = vmatprep.subr.bf16.mxu0 %v928
        %998 = vmatpush1.bf16.msra.mxu0 %v927
        %999 = vmatprep.subr.bf16.mxu0 %v926
        %1000 = vmatpush1.bf16.msra.mxu0 %v925
        %1001 = vmatprep.subr.bf16.mxu0 %v924
        %1002 = vmatpush1.bf16.msra.mxu0 %v923
        %1003 = vmatprep.subr.bf16.mxu0 %v954
        %1004 = vmatpush2.bf16.msra.mxu0 %v953
        %1005 = vmatprep.subr.bf16.mxu0 %v952
        %1006 = vmatpush2.bf16.msra.mxu0 %v951
        %1007 = vmatprep.subr.bf16.mxu0 %v950
        %1008 = vmatpush2.bf16.msra.mxu0 %v949
        %1009 = vmatprep.subr.bf16.mxu0 %v948
        %1010 = vmatpush2.bf16.msra.mxu0 %v947
        %1011 = vmatprep.subr.bf16.mxu0 %v946
        %1012 = vmatpush2.bf16.msra.mxu0 %v945
        %1013 = vmatprep.subr.bf16.mxu0 %v944
        %1014 = vmatpush2.bf16.msra.mxu0 %v943
        %1015 = vmatprep.subr.bf16.mxu0 %v942
        %1016 = vmatpush2.bf16.msra.mxu0 %v941
        %1017 = vmatprep.subr.bf16.mxu0 %v940
        %1018 = vmatpush2.bf16.msra.mxu0 %v939
        %1019 = vmatprep.mubr.bf16.mxu0 %v780
        %1020 = vmatmul.mubr.bf16.gmra.mxu0 %v779
        %v1021 = vpop.f32.mrf.mxu0
        %v1022 = vadd.f32 0.0, %v1021
        %v1023 = vpop.f32.mrf.mxu0
        %v1024 = vadd.f32 0.0, %v1023
        %v1025 = vpop.f32.mrf.mxu0
        %v1026 = vadd.f32 0.0, %v1025
        %v1027 = vpop.f32.mrf.mxu0
        %v1028 = vadd.f32 0.0, %v1027
        %1029 = vmatprep.mubr.bf16.mxu0 %v782
        %1030 = vmatmul.mubr.bf16.gmra.mxu0 %v781
        %v1031 = vpop.f32.mrf.mxu0
        %v1032 = vadd.f32 0.0, %v1031
        %v1033 = vpop.f32.mrf.mxu0
        %v1034 = vadd.f32 0.0, %v1033
        %v1035 = vpop.f32.mrf.mxu0
        %v1036 = vadd.f32 0.0, %v1035
        %v1037 = vpop.f32.mrf.mxu0
        %v1038 = vadd.f32 0.0, %v1037
        %1039 = vmatprep.mubr.bf16.mxu0 %v792
        %1040 = vmatmul.mubr.bf16.gmra.mxu0 %v791
        %v1041 = vpop.f32.mrf.mxu0
        %v1042 = vadd.f32 0.0, %v1041
        %v1043 = vpop.f32.mrf.mxu0
        %v1044 = vadd.f32 0.0, %v1043
        %v1045 = vpop.f32.mrf.mxu0
        %v1046 = vadd.f32 0.0, %v1045
        %v1047 = vpop.f32.mrf.mxu0
        %v1048 = vadd.f32 0.0, %v1047
        %1049 = vmatprep.mubr.bf16.mxu0 %v794
        %1050 = vmatmul.mubr.bf16.gmra.mxu0 %v793
        %v1051 = vpop.f32.mrf.mxu0
        %v1052 = vadd.f32 0.0, %v1051
        %v1053 = vpop.f32.mrf.mxu0
        %v1054 = vadd.f32 0.0, %v1053
        %v1055 = vpop.f32.mrf.mxu0
        %v1056 = vadd.f32 0.0, %v1055
        %v1057 = vpop.f32.mrf.mxu0
        %v1058 = vadd.f32 0.0, %v1057
        %1059 = vdwg.mxu0
        %v1060 = vmul.f32 %v1022, 0.015625
        %v1061 = vmul.f32 %v1024, 0.015625
        %v1062 = vmul.f32 %v1026, 0.015625
        %v1063 = vmul.f32 %v1028, 0.015625
        %v1064 = vmul.f32 %v1032, 0.015625
        %v1065 = vmul.f32 %v1034, 0.015625
        %v1066 = vmul.f32 %v1036, 0.015625
        %v1067 = vmul.f32 %v1038, 0.015625
        %v1068 = vmul.f32 %v1042, 0.015625
        %v1069 = vmul.f32 %v1044, 0.015625
        %v1070 = vmul.f32 %v1046, 0.015625
        %v1071 = vmul.f32 %v1048, 0.015625
        %v1072 = vmul.f32 %v1052, 0.015625
        %v1073 = vmul.f32 %v1054, 0.015625
        %v1074 = vmul.f32 %v1056, 0.015625
        %v1075 = vmul.f32 %v1058, 0.015625
        %v1076 = vmul.f32 %v1060, %v1060
        %v1077 = vmul.f32 %v1061, %v1061
        %v1078 = vmul.f32 %v1062, %v1062
        %v1079 = vmul.f32 %v1063, %v1063
        %v1080 = vmul.f32 %v1064, %v1064
        %v1081 = vmul.f32 %v1065, %v1065
        %v1082 = vmul.f32 %v1066, %v1066
        %v1083 = vmul.f32 %v1067, %v1067
        %v1084 = vsub.f32 %v1068, %v1076
        %v1085 = vsub.f32 %v1069, %v1077
        %v1086 = vsub.f32 %v1070, %v1078
        %v1087 = vsub.f32 %v1071, %v1079
        %v1088 = vsub.f32 %v1072, %v1080
        %v1089 = vsub.f32 %v1073, %v1081
        %v1090 = vsub.f32 %v1074, %v1082
        %v1091 = vsub.f32 %v1075, %v1083
        %v1092 = vmax.f32 %v1084, 0.0
        %v1093 = vmax.f32 %v1085, 0.0
        %v1094 = vmax.f32 %v1086, 0.0
        %v1095 = vmax.f32 %v1087, 0.0
        %v1096 = vmax.f32 %v1088, 0.0
        %v1097 = vmax.f32 %v1089, 0.0
        %v1098 = vmax.f32 %v1090, 0.0
        %v1099 = vmax.f32 %v1091, 0.0
        %v1100 = vsub.f32 %v771, %v1060
        %v1101 = vsub.f32 %v772, %v1061
        %v1102 = vsub.f32 %v773, %v1062
        %v1103 = vsub.f32 %v774, %v1063
        %v1104 = vsub.f32 %v775, %v1064
        %v1105 = vsub.f32 %v776, %v1065
        %v1106 = vsub.f32 %v777, %v1066
        %v1107 = vsub.f32 %v778, %v1067
        %v1108 = vadd.f32 %v1092, 1e-05
        %v1109 = vadd.f32 %v1093, 1e-05
        %v1110 = vadd.f32 %v1094, 1e-05
        %v1111 = vadd.f32 %v1095, 1e-05
        %v1112 = vadd.f32 %v1096, 1e-05
        %v1113 = vadd.f32 %v1097, 1e-05
        %v1114 = vadd.f32 %v1098, 1e-05
        %v1115 = vadd.f32 %v1099, 1e-05
        %v1116 = vrsqrt.pop %v1108
        %v1117 = vrsqrt.pop %v1109
        %v1118 = vrsqrt.pop %v1110
        %v1119 = vrsqrt.pop %v1111
        %v1120 = vrsqrt.pop %v1112
        %v1121 = vrsqrt.pop %v1113
        %v1122 = vrsqrt.pop %v1114
        %v1123 = vrsqrt.pop %v1115
        %v1124 = vmul.f32 %v1100, %v1116
        %v1125 = vmul.f32 %v1101, %v1117
        %v1126 = vmul.f32 %v1102, %v1118
        %v1127 = vmul.f32 %v1103, %v1119
        %v1128 = vmul.f32 %v1104, %v1120
        %v1129 = vmul.f32 %v1105, %v1121
        %v1130 = vmul.f32 %v1106, %v1122
        %v1131 = vmul.f32 %v1107, %v1123
        %v1132 = vld [vmem:[%s6] sm:$0x3]
        %v1134 = vlaneseq
        %v1135 = vshrl.u32 %v1134, 7
        %v1136 = vsub.s32 0, %v1135
        %v1137 = vrot.slane %v1132, %v1136
        %v1138 = vlaneseq
        %v1139 = vshrl.u32 %v1138, 7
        %v1140 = vsub.s32 1, %v1139
        %v1141 = vrot.slane %v1132, %v1140
        %v1144 = vmul.f32 %v1124, %v1137
        %v1145 = vmul.f32 %v1125, %v1141
        %v1146 = vmul.f32 %v1126, %v1137
        %v1147 = vmul.f32 %v1127, %v1141
        %v1148 = vmul.f32 %v1128, %v1137
        %v1149 = vmul.f32 %v1129, %v1141
        %v1150 = vmul.f32 %v1130, %v1137
        %v1151 = vmul.f32 %v1131, %v1141
        %v1152 = vld [vmem:[%s7] sm:$0x3]
        %v1154 = vlaneseq
        %v1155 = vshrl.u32 %v1154, 7
        %v1156 = vsub.s32 0, %v1155
        %v1157 = vrot.slane %v1152, %v1156
        %v1158 = vlaneseq
        %v1159 = vshrl.u32 %v1158, 7
        %v1160 = vsub.s32 1, %v1159
        %v1161 = vrot.slane %v1152, %v1160
        %v1164 = vadd.f32 %v1144, %v1157
        %v1165 = vadd.f32 %v1145, %v1161
        %v1166 = vadd.f32 %v1146, %v1157
        %v1167 = vadd.f32 %v1147, %v1161
        %v1168 = vadd.f32 %v1148, %v1157
        %v1169 = vadd.f32 %v1149, %v1161
        %v1170 = vadd.f32 %v1150, %v1157
        %v1171 = vadd.f32 %v1151, %v1161
        %1172 = vst [vmem:[%s352] sm:$0xff] %v1164
        %1173 = vst [vmem:[%s352 + $0x8] sm:$0xff] %v1165
        %1174 = vst [vmem:[%s352 + $0x10] sm:$0xff] %v1166
        %1175 = vst [vmem:[%s352 + $0x18] sm:$0xff] %v1167
        %1176 = vst [vmem:[%s352 + $0x20] sm:$0xff] %v1168
        %1177 = vst [vmem:[%s352 + $0x28] sm:$0xff] %v1169
        %1178 = vst [vmem:[%s352 + $0x30] sm:$0xff] %v1170
        %1179 = vst [vmem:[%s352 + $0x38] sm:$0xff] %v1171
        %s1180 = sand.u32 %s207, 1
        %s1181 = scalar_lea.sflag [#allocation4], %s1180
        %s1182 = sand.u32 %s207, 1
        %s1183 = smul.addr %s1182, 64
        %s1184 = scalar_lea.vmem [#allocation8], %s1183
        // Predicated region
        $region65: #{tpu_custom_call.1} parent=51 // pred_check
          %p1185 = pneg %p217
        $region66: #{tpu_custom_call.1} parent=51 // pred_check_branch
          %1187 = sbr.rel (%p1185) target = $region68
        $region67: #{tpu_custom_call.1} parent=51 // pred_region
          %s1188 = smul.u32 2, %s26
          %s1190 = ssub.s32 1024, 1024
          %1191 = vsyncadd %s1181, %s1190
          %s1192 = smul.addr %s1188, 128
          %s1193 = scalar_lea.hbm %s8, %s1192
          %s1194 = sshll.u32 %s1184, 4
          %s1195 = int_to_ptr.vmem [resolvable:$true] %s1194
          %1200 = dma.vmem_to_hbm [thread:$0]  %s1195, 1024, %s1193, %s1181, 256, 512, 16
        $region68: #{tpu_custom_call.1} parent=51 // pred_fallthru
          _
      $region52: #{tpu_custom_call.1} parent=5 // pred_fallthru
        _
      %p1201 = scmp.le.s32.totalorder 2, %s21
      // Predicated region
      $region69: #{tpu_custom_call.1} parent=5 // pred_check
        %p1202 = pneg %p1201
      $region70: #{tpu_custom_call.1} parent=5 // pred_check_branch
        %1204 = sbr.rel (%p1202) target = $region72
      $region71: #{tpu_custom_call.1} parent=5 // pred_region
        %s1205 = ssub.s32 %s21, 2
        // Predicated region
        $region73: #{tpu_custom_call.1} parent=71 // pred_check
          %p1206 = pneg %p223
        $region74: #{tpu_custom_call.1} parent=71 // pred_check_branch
          %1208 = sbr.rel (%p1206) target = $region76
        $region75: #{tpu_custom_call.1} parent=71 // pred_region
          %s1209 = sand.u32 %s208, 1
          %s1210 = scalar_lea.sflag [#allocation4], %s1209
          %s1211 = sand.u32 %s208, 1
          %s1212 = smul.addr %s1211, 64
          %s1213 = scalar_lea.vmem [#allocation8], %s1212
          %1214 = dma.done %s1210, 1024
        $region76: #{tpu_custom_call.1} parent=71 // pred_fallthru
          _
      $region72: #{tpu_custom_call.1} parent=5 // pred_fallthru
        _
    $region6: #{tpu_custom_call.1} parent=1 // loop_footer
      %s25 = sadd.s32 1, %s21
    $region7: #{tpu_custom_call.1} parent=1 // loop_footer_branch
      %20 = sbr.rel target = $region3
    $region8: #{tpu_custom_call.1} parent=1 // loop_exit
      _
    %1215 = vsyncpa [#allocation3], 1
    %s1216 = scalar_lea.sflag [#allocation3], 1
    %1217 = vsyncpa %s1216, 1
    %1218 = vsyncpa [#allocation6], 1
    %1219 = vsyncpa [#allocation4], 1
    %s1220 = scalar_lea.sflag [#allocation4], 1
    %1221 = vsyncpa %s1220, 1

</llo_original>
